<compile_context>
chip_gen: v7x
topology: tpu7x:2x2x1
jax: 0.10.0
libtpu: 0.0.40
codegen_flags: <defaults>
</compile_context>

<pallas_src>
import functools

import jax
import jax.numpy as jnp
from jax.experimental import pallas as pl
from jax.experimental.pallas import tpu as pltpu


def net_kernel(x_ref, w_ref, o_ref):
    # x_ref: (F, TB)  -- features on sublanes, batch on lanes
    # w_ref: (F, 1)   -- fused weight: w1 * w2 (IntegerLinear's un-rounded
    #                    uniform weight times SigmodNeuron's scalar)
    # o_ref: (1, TB)  -- lane-dense output row
    # fc1 + sigmod linear (both bias-free, folded): broadcast-multiply +
    # cross-sublane reduce.  VPU/XLU only; the kernel is DMA-bound.
    y = jnp.sum(x_ref[...] * w_ref[...], axis=0, keepdims=True)      # (1, TB) f32
    # sigmoid in f32 (EUP exp): y -> -inf gives exactly 0.0 (out 0), y -> +inf
    # saturates to exactly 1.0 (out 10), matching PyTorch f32 behaviour.
    s = 1.0 / (1.0 + jnp.exp(-y))
    o_ref[...] = jnp.floor(s * 10.0)


def _ceil_to(a, m):
    return ((a + m - 1) // m) * m


@functools.partial(jax.jit, static_argnames=("tile_b", "feature_major"))
def net_forward(x, w1, w2, *, tile_b=None, feature_major=False):
    """x: (B, 9) f32 (or (9, B) if feature_major), w1: (1, 9), w2: (1, 1) -> (B, 1)."""
    if feature_major:
        F, B = x.shape
    else:
        B, F = x.shape
    assert w1.shape == (1, F) and w2.shape == (1, 1)

    # Pad batch only to the lane width (128), not to the tile size.
    B_pad = _ceil_to(B, 128)

    # Per-generation tile size (lanes).  v5e's default scoped VMEM is 16 MiB,
    # v6e/v7x's is 32 MiB.
    if tile_b is None:
        kind = jax.devices()[0].device_kind.lower()
        tile_b = 65536 if "v5" in kind else 131072
    TB = min(tile_b, B_pad)
    # Give the second TensorCore (v7x) work when the batch would otherwise be
    # a single tile; costs only one extra ~0.35 us grid step on 1-TC chips.
    if TB == B_pad and B_pad >= 4096:
        TB = _ceil_to(B_pad // 2, 128)
    n_tiles = pl.cdiv(B_pad, TB)

    # Single fused transpose+pad+cast pass (no zeros + scatter double-write).
    xf = x.astype(jnp.float32)
    xt = xf if feature_major else xf.T                       # (F, B)
    xt = jnp.pad(xt, ((0, 0), (0, B_pad - B)))               # (F, B_pad)

    # Fold SigmodNeuron's scalar weight into fc1's weight (bias-free chain).
    w_eff = (w1.astype(jnp.float32) * w2.astype(jnp.float32)[0, 0]).T   # (F, 1)

    # VMEM budget: 2 input buffers of (16-sublane-padded x TB) f32 plus
    # 2 output buffers of (8-sublane-padded x TB) f32, ~24 MiB at TB=131072.
    vmem_budget = 2 * (16 * TB * 4) + 2 * (8 * TB * 4) + (2 << 20)
    vmem_limit = min(max(vmem_budget, 16 * 1024 * 1024), 32 * 1024 * 1024)

    out_row = pl.pallas_call(
        net_kernel,
        out_shape=jax.ShapeDtypeStruct((1, B_pad), jnp.float32),
        grid=(n_tiles,),
        in_specs=[
            pl.BlockSpec((F, TB), lambda i: (0, i)),   # streamed batch tiles
            pl.BlockSpec((F, 1), lambda i: (0, 0)),    # resident fused weight
        ],
        out_specs=pl.BlockSpec((1, TB), lambda i: (0, i)),
        compiler_params=pltpu.CompilerParams(
            dimension_semantics=("parallel",),
            vmem_limit_bytes=vmem_limit,
        ),
        cost_estimate=pl.CostEstimate(
            flops=B_pad * (2 * F + 4),
            transcendentals=B_pad,
            bytes_accessed=4 * (F * B_pad + B_pad + F),
        ),
    )(xt, w_eff)

    # Padded lanes (sigmoid(0) -> 5 and ragged-block garbage) are dropped here.
    return out_row[0, :B].reshape(B, 1)


if __name__ == "__main__":
    key = jax.random.PRNGKey(0)
    kx, kw1, kw2 = jax.random.split(key, 3)

    B, F = 8, 9                        # Net expects in_features = 9
    x = jax.random.normal(kx, (B, F), dtype=jnp.float32)

    # Effective fc1 weight: IntegerLinear re-samples U(-1, 1) in-place each
    # forward and discards the rounded copy -> sample the un-rounded uniform
    # weight once, deterministically, here.
    # TODO(synk): the per-forward RNG re-sampling happens host-side, not in-kernel.
    w1 = jax.random.uniform(kw1, (1, F), dtype=jnp.float32, minval=-1.0, maxval=1.0)
    # SigmodNeuron's nn.Linear(1, 1, bias=False) weight.
    w2 = jax.random.uniform(kw2, (1, 1), dtype=jnp.float32, minval=-1.0, maxval=1.0)

    out = jax.block_until_ready(net_forward(x, w1, w2))

    # Pure-JAX reference with the original (unfused) PyTorch op order.
    y_ref = x @ w1.T                   # (B, 1)  fc1, bias=False
    t_ref = y_ref @ w2.T               # (B, 1)  sigmod linear, bias=False
    ref = jnp.floor((1.0 / (1.0 + jnp.exp(-t_ref))) * 10.0)

    assert out.shape == (B, 1)
    assert jnp.allclose(out, ref, rtol=1e-5, atol=1e-5), (out, ref)

    print("KERNEL_OK")
</pallas_src>

<mosaic_0001>
module attributes {stable_mosaic.version = 11 : i64} {
  func.func @net_kernel(%arg0: i32, %arg1: memref<9x128xf32, #tpu.memory_space<vmem>>, %arg2: memref<9x1xf32, #tpu.memory_space<vmem>>, %arg3: memref<1x128xf32, #tpu.memory_space<vmem>>) attributes {dimension_semantics = [#tpu.dimension_semantics<parallel>], iteration_bounds = array<i64: 1>, scalar_prefetch = 0 : i64, scratch_operands = 0 : i64, tpu.core_type = #tpu.core_type<tc>, window_params = [{transform_indices = @transform_0, window_bounds = array<i64: 9, 128>}, {pipeline_mode = #tpu.pipeline_mode<synchronous>, transform_indices = @transform_1, window_bounds = array<i64: 9, 1>}, {transform_indices = @transform_2, window_bounds = array<i64: 1, 128>}]} {
    %c0 = arith.constant 0 : index
    %c0_0 = arith.constant 0 : index
    %0 = vector.load %arg1[%c0, %c0_0] : memref<9x128xf32, #tpu.memory_space<vmem>>, vector<9x128xf32>
    %c0_1 = arith.constant 0 : index
    %c0_2 = arith.constant 0 : index
    %1 = vector.load %arg2[%c0_1, %c0_2] : memref<9x1xf32, #tpu.memory_space<vmem>>, vector<9x1xf32>
    %2 = vector.broadcast %1 : vector<9x1xf32> to vector<9x128xf32>
    %3 = arith.mulf %0, %2 : vector<9x128xf32>
    %cst = arith.constant dense<0.000000e+00> : vector<128xf32>
    %4 = vector.multi_reduction <add>, %3, %cst [0] : vector<9x128xf32> to vector<128xf32>
    %5 = vector.shape_cast %4 : vector<128xf32> to vector<1x128xf32>
    %cst_3 = arith.constant 0.000000e+00 : f32
    %6 = vector.broadcast %cst_3 : f32 to vector<1x128xf32>
    %7 = arith.subf %6, %5 : vector<1x128xf32>
    %8 = math.exp %7 : vector<1x128xf32>
    %cst_4 = arith.constant 1.000000e+00 : f32
    %9 = vector.broadcast %cst_4 : f32 to vector<1x128xf32>
    %10 = arith.addf %9, %8 : vector<1x128xf32>
    %cst_5 = arith.constant 1.000000e+00 : f32
    %11 = vector.broadcast %cst_5 : f32 to vector<1x128xf32>
    %12 = arith.divf %11, %10 : vector<1x128xf32>
    %cst_6 = arith.constant 1.000000e+01 : f32
    %13 = vector.broadcast %cst_6 : f32 to vector<1x128xf32>
    %14 = arith.mulf %12, %13 : vector<1x128xf32>
    %15 = math.floor %14 : vector<1x128xf32>
    %c0_7 = arith.constant 0 : index
    %c0_8 = arith.constant 0 : index
    %16 = vector.load %arg3[%c0_7, %c0_8] : memref<1x128xf32, #tpu.memory_space<vmem>>, vector<1x128xf32>
    tpu.vector_store %arg3[%c0_7, %c0_8], %15 {strides = array<i32>} : memref<1x128xf32, #tpu.memory_space<vmem>>, vector<1x128xf32>,
    return
  }
  func.func @transform_0(%arg0: i32) -> (i32, i32) {
    %c0_i32 = arith.constant 0 : i32
    %c0_i32_0 = arith.constant 0 : i32
    return %c0_i32, %arg0 : i32, i32
  }
  func.func @transform_1(%arg0: i32) -> (i32, i32) {
    %c0_i32 = arith.constant 0 : i32
    %c0_i32_0 = arith.constant 0 : i32
    %c0_i32_1 = arith.constant 0 : i32
    return %c0_i32, %c0_i32_0 : i32, i32
  }
  func.func @transform_2(%arg0: i32) -> (i32, i32) {
    %c0_i32 = arith.constant 0 : i32
    %c0_i32_0 = arith.constant 0 : i32
    return %c0_i32, %arg0 : i32, i32
  }
}

</mosaic_0001>

<llo_original>
// kernel: net_forward.1
$region0: #{net_forward.1}
  #allocation0 [shape = 'u32[]', space=smem, size = 0x4, offset = 0x4, fixed_abs, tag = 'smem constant byte address 0x4 - core index']
  #allocation1 [shape = 'u32[144,128]{1,0:T(1,128)}', space=vmem, size = 0x12000, scoped, tag = 'internal scratch']
  %s0 = inlined_call_operand.vmem [shape: f32[9,128], index: 0, kind: input, shape index: {}]
  %s1 = inlined_call_operand.vmem [shape: f32[9,1], index: 1, kind: input, shape index: {}]
  %s2 = inlined_call_operand.vmem [shape: f32[1,128], index: 2, kind: output, shape index: {}]
  %s3 = sld [smem:[#allocation0]]
  $region18: #{net_forward.1} parent=0
    _
  %s5 = ssub.s32 1, %s3
  %s6 = scalar_select 0, %s5, %s3
  // Predicated region
  $region2: #{net_forward.1} parent=0 // pred_check
    _
  $region3: #{net_forward.1} parent=0 // pred_check_branch
    %8 = sbr.rel (0) target = $region5
  $region4: #{net_forward.1} parent=0 // pred_region
    _
  $region5: #{net_forward.1} parent=0 // pred_fallthru
    _
  // Predicated region
  $region6: #{net_forward.1} parent=0 // pred_check
    _
  $region7: #{net_forward.1} parent=0 // pred_check_branch
    %10 = sbr.rel (0) target = $region9
  $region8: #{net_forward.1} parent=0 // pred_region
    _
  $region9: #{net_forward.1} parent=0 // pred_fallthru
    _
  %v11 = vld [vmem:[%s0] sm:$0xff]
  %v12 = vld [vmem:[%s0 + $0x8] sm:$0x1]
  %v13 = vld [vmem:[%s1] sm:$0xff]
  %v14 = vld [vmem:[%s1 + $0x8] sm:$0x1]
  %16 = vset.pattern.permute.xlu0 0
  %17 = vperm.xlu0 %16, %v13
  %v18 = vpop.permute.xlu0 %17
  %21 = vset.pattern.permute.xlu0 0
  %22 = vperm.xlu0 %21, %v14
  %v23 = vpop.permute.xlu0 %22
  %v25 = vmul.f32 %v11, %v18
  %v26 = vmul.f32 %v12, %v23
  %vm27 = vcmask 1040384
  %v28 = vsel %vm27, %v26, 0.0
  %v29 = vadd.f32 %v25, %v28
  %v30 = vrot.slane %v29, 4
  %v31 = vadd.f32 %v29, %v30
  %v32 = vrot.slane %v31, 2
  %v33 = vadd.f32 %v31, %v32
  %v34 = vrot.slane %v33, 1
  %v35 = vadd.f32 %v33, %v34
  %v36 = vsub.f32 0.0, %v35
  %v37 = vmul.f32 %v36, 1.442695
  %v38 = vpow.pop %v37
  %v39 = vadd.f32 %v38, 1.0
  %v40 = vrcp.pop %v39
  %v41 = vmul.f32 1.0, %v40
  %v42 = vmul.f32 %v41, 10.0
  %v43 = vfloor.f32 %v42
  %44 = vst [vmem:[%s2] sm:$0x1] %v43
  // Predicated region
  $region10: #{net_forward.1} parent=0 // pred_check
    _
  $region11: #{net_forward.1} parent=0 // pred_check_branch
    %46 = sbr.rel (0) target = $region13
  $region12: #{net_forward.1} parent=0 // pred_region
    _
  $region13: #{net_forward.1} parent=0 // pred_fallthru
    _
  // Predicated region
  $region14: #{net_forward.1} parent=0 // pred_check
    _
  $region15: #{net_forward.1} parent=0 // pred_check_branch
    %48 = sbr.rel (0) target = $region17
  $region16: #{net_forward.1} parent=0 // pred_region
    _
  $region17: #{net_forward.1} parent=0 // pred_fallthru
    _

</llo_original>
